<compile_context>
chip_gen: v7x
topology: tpu7x:2x2x1
jax: 0.10.0
libtpu: 0.0.40
codegen_flags: <defaults>
</compile_context>

<pallas_src>
import jax
import jax.numpy as jnp
from jax.experimental import pallas as pl
from jax.experimental.pallas import tpu as pltpu


def _mf_block_kernel(uid_ref, iid_ref, u_hbm, i_hbm, out_ref, ubuf, ibuf, sem):
    """Gather BLK augmented user/item rows via per-row DMA, then batched dot.

    uid_ref / iid_ref : (Bpad,) int32 in SMEM (scalar prefetch)
    u_hbm / i_hbm     : (n_users, F+2) / (n_items, F+2) tables in HBM (pl.ANY)
    out_ref           : (1, 1, BLK) f32 lane-dense output block
    ubuf / ibuf       : (BLK, F+2) VMEM gather scratch
    sem               : DMA semaphores, shape (2,)
    """
    blk = ubuf.shape[0]
    base = pl.program_id(0) * blk

    # Issue every row gather for this block before waiting, so all 2*BLK small
    # DMAs are in flight concurrently and HBM latency is overlapped.
    @pl.loop(0, blk)
    def _start(j):
        pltpu.make_async_copy(u_hbm.at[uid_ref[base + j]], ubuf.at[j], sem.at[0]).start()
        pltpu.make_async_copy(i_hbm.at[iid_ref[base + j]], ibuf.at[j], sem.at[1]).start()

    @pl.loop(0, blk)
    def _wait(j):
        pltpu.make_async_copy(u_hbm.at[uid_ref[base + j]], ubuf.at[j], sem.at[0]).wait()
        pltpu.make_async_copy(i_hbm.at[iid_ref[base + j]], ibuf.at[j], sem.at[1]).wait()

    # Augmented rows: [uf..., ub+gb, 1] . [if..., 1, ib] = dot + ub + ib + gb.
    u = ubuf[...].astype(jnp.float32)        # (BLK, F+2)  in-kernel cast only
    it = ibuf[...].astype(jnp.float32)       # (BLK, F+2)
    pred = jnp.sum(u * it, axis=-1)          # (BLK,)  VPU mul + XLU lane reduce
    out_ref[...] = pred.reshape(1, 1, blk)   # lane-dense packed store


def mf_forward(user_ids, item_ids, user_factors, item_factors,
               user_biases, item_biases, global_bias, *, block_size=None):
    B = user_ids.shape[0]
    n_users, F = user_factors.shape
    n_items = item_factors.shape[0]
    dt = user_factors.dtype

    # Block of examples per grid step (multiple of 128 for lane-dense output).
    if block_size is None:
        block_size = 256 if B >= 256 else 128
    BLK = int(block_size)
    n_blocks = -(-B // BLK)
    Bpad = n_blocks * BLK

    # Clamp ids so an invalid id cannot trigger an out-of-range DMA.
    # TODO(synk): PyTorch embedding would raise on out-of-range ids; here they
    # are clamped, which silently produces a (valid-row) prediction instead.
    uid = jnp.clip(user_ids.astype(jnp.int32), 0, n_users - 1)
    iid = jnp.clip(item_ids.astype(jnp.int32), 0, n_items - 1)
    if Bpad != B:
        # Padded tail uses id 0; its outputs are sliced away below.
        uid = jnp.pad(uid, (0, Bpad - B))
        iid = jnp.pad(iid, (0, Bpad - B))
    # TODO(synk): for very large batches (>~100K), chunk the batch across
    # multiple pallas_calls to keep the SMEM-resident id arrays small.

    # Bias-augmented tables (native dtype; no full-table f32 upcast).
    gb = global_bias.reshape(1, 1).astype(jnp.float32)
    u_aug = jnp.concatenate(
        [user_factors,
         (user_biases.astype(jnp.float32) + gb).astype(dt),
         jnp.ones((n_users, 1), dt)], axis=1)                    # (n_users, F+2)
    i_aug = jnp.concatenate(
        [item_factors,
         jnp.ones((n_items, 1), dt),
         item_biases.astype(dt)], axis=1)                        # (n_items, F+2)
    F_aug = F + 2

    grid_spec = pltpu.PrefetchScalarGridSpec(
        num_scalar_prefetch=2,              # uid, iid -> SMEM
        grid=(n_blocks,),
        in_specs=[
            pl.BlockSpec(memory_space=pl.ANY),   # user table stays in HBM
            pl.BlockSpec(memory_space=pl.ANY),   # item table stays in HBM
        ],
        out_specs=pl.BlockSpec((1, 1, BLK), lambda i, uid, iid: (i, 0, 0)),
        scratch_shapes=[
            pltpu.VMEM((BLK, F_aug), dt),        # gathered user rows
            pltpu.VMEM((BLK, F_aug), dt),        # gathered item rows
            pltpu.SemaphoreType.DMA((2,)),       # user / item gather sems
        ],
    )

    out = pl.pallas_call(
        _mf_block_kernel,
        out_shape=jax.ShapeDtypeStruct((n_blocks, 1, BLK), jnp.float32),
        grid_spec=grid_spec,
        compiler_params=pltpu.CompilerParams(
            dimension_semantics=("parallel",)),   # blocks split across TCs (v7x)
    )(uid, iid, u_aug, i_aug)

    return out.reshape(-1)[:B]


def mf_forward_ref(user_ids, item_ids, user_factors, item_factors,
                   user_biases, item_biases, global_bias):
    ue = user_factors[user_ids]            # (B, F)
    ie = item_factors[item_ids]            # (B, F)
    ubias = user_biases[user_ids, 0]       # (B,)
    ibias = item_biases[item_ids, 0]       # (B,)
    dot = jnp.sum(ue * ie, axis=1)         # (B,)
    return global_bias[0] + ubias + ibias + dot


if __name__ == "__main__":
    # Small shapes consistent with the module.
    n_users, n_items, n_factors = 64, 96, 32
    batch = 8

    key = jax.random.PRNGKey(0)
    k_uf, k_if, k_ub, k_ib, k_gb, k_uid, k_iid = jax.random.split(key, 7)

    user_factors = 0.1 * jax.random.normal(k_uf, (n_users, n_factors), jnp.float32)
    item_factors = 0.1 * jax.random.normal(k_if, (n_items, n_factors), jnp.float32)
    # Non-zero biases so the bias-folding path is actually exercised.
    user_biases = 0.1 * jax.random.normal(k_ub, (n_users, 1), jnp.float32)
    item_biases = 0.1 * jax.random.normal(k_ib, (n_items, 1), jnp.float32)
    global_bias = 0.1 * jax.random.normal(k_gb, (1,), jnp.float32)

    user_ids = jax.random.randint(k_uid, (batch,), 0, n_users, dtype=jnp.int32)
    item_ids = jax.random.randint(k_iid, (batch,), 0, n_items, dtype=jnp.int32)

    pred = mf_forward(user_ids, item_ids, user_factors, item_factors,
                      user_biases, item_biases, global_bias)
    pred = jax.block_until_ready(pred)

    ref = mf_forward_ref(user_ids, item_ids, user_factors, item_factors,
                         user_biases, item_biases, global_bias)

    assert pred.shape == (batch,)
    assert jnp.allclose(pred, ref, atol=1e-5, rtol=1e-5), (pred, ref)
    print("KERNEL_OK")
</pallas_src>

<mosaic_0001>
module attributes {stable_mosaic.version = 11 : i64} {
  func.func @_mf_block_kernel(%arg0: i32, %arg1: memref<128xi32, #tpu.memory_space<smem>>, %arg2: memref<128xi32, #tpu.memory_space<smem>>, %arg3: memref<64x34xf32, #tpu.memory_space<any>>, %arg4: memref<96x34xf32, #tpu.memory_space<any>>, %arg5: memref<1x1x128xf32, #tpu.memory_space<vmem>>, %arg6: memref<128x34xf32, #tpu.memory_space<vmem>>, %arg7: memref<128x34xf32, #tpu.memory_space<vmem>>, %arg8: memref<2x!tpu.dma_semaphore, #tpu.memory_space<semaphore_mem>>) attributes {dimension_semantics = [#tpu.dimension_semantics<parallel>], iteration_bounds = array<i64: 1>, scalar_prefetch = 2 : i64, scratch_operands = 3 : i64, tpu.core_type = #tpu.core_type<tc>, window_params = [{}, {}, {transform_indices = @transform_2, window_bounds = array<i64: 1, 1, 128>}]} {
    %c128_i32 = arith.constant 128 : i32
    %0 = arith.muli %arg0, %c128_i32 : i32
    %c0_i32 = arith.constant 0 : i32
    %c128_i32_0 = arith.constant 128 : i32
    %1 = arith.addi %c0_i32, %c128_i32_0 : i32
    %c1_i32 = arith.constant 1 : i32
    scf.for %arg9 = %c0_i32 to %1 step %c1_i32  : i32 {
      %c1_i32_12 = arith.constant 1 : i32
      %9 = arith.muli %arg9, %c1_i32_12 : i32
      %c0_i32_13 = arith.constant 0 : i32
      %10 = arith.addi %c0_i32_13, %9 : i32
      %11 = arith.addi %0, %10 : i32
      %12 = arith.index_cast %11 : i32 to index
      %13 = memref.load %arg1[%12] : memref<128xi32, #tpu.memory_space<smem>>
      %c0_i32_14 = arith.constant 0 : i32
      %c0_i32_15 = arith.constant 0 : i32
      %14 = tpu.memref_slice %arg3[%13, %c0_i32_15] : memref<64x34xf32, #tpu.memory_space<any>> -> memref<1x34xf32, #tpu.memory_space<any>>
      %15 = tpu.memref_squeeze %14 : memref<1x34xf32, #tpu.memory_space<any>> -> memref<34xf32, #tpu.memory_space<any>>
      %c0_i32_16 = arith.constant 0 : i32
      %16 = tpu.memref_slice %arg6[%10, %c0_i32_16] : memref<128x34xf32, #tpu.memory_space<vmem>> -> memref<1x34xf32, #tpu.memory_space<vmem>>
      %17 = tpu.memref_squeeze %16 : memref<1x34xf32, #tpu.memory_space<vmem>> -> memref<34xf32, #tpu.memory_space<vmem>>
      %18 = tpu.memref_slice %arg8[%c0_i32_14] : memref<2x!tpu.dma_semaphore, #tpu.memory_space<semaphore_mem>> -> memref<1x!tpu.dma_semaphore, #tpu.memory_space<semaphore_mem>>
      %19 = tpu.memref_squeeze %18 : memref<1x!tpu.dma_semaphore, #tpu.memory_space<semaphore_mem>> -> memref<!tpu.dma_semaphore, #tpu.memory_space<semaphore_mem>>
      tpu.enqueue_dma source(%15 : memref<34xf32, #tpu.memory_space<any>>) target(%17 : memref<34xf32, #tpu.memory_space<vmem>>) target_semaphore(%19 : memref<!tpu.dma_semaphore, #tpu.memory_space<semaphore_mem>>)
      %20 = arith.addi %0, %10 : i32
      %21 = arith.index_cast %20 : i32 to index
      %22 = memref.load %arg2[%21] : memref<128xi32, #tpu.memory_space<smem>>
      %c1_i32_17 = arith.constant 1 : i32
      %c0_i32_18 = arith.constant 0 : i32
      %23 = tpu.memref_slice %arg4[%22, %c0_i32_18] : memref<96x34xf32, #tpu.memory_space<any>> -> memref<1x34xf32, #tpu.memory_space<any>>
      %24 = tpu.memref_squeeze %23 : memref<1x34xf32, #tpu.memory_space<any>> -> memref<34xf32, #tpu.memory_space<any>>
      %c0_i32_19 = arith.constant 0 : i32
      %25 = tpu.memref_slice %arg7[%10, %c0_i32_19] : memref<128x34xf32, #tpu.memory_space<vmem>> -> memref<1x34xf32, #tpu.memory_space<vmem>>
      %26 = tpu.memref_squeeze %25 : memref<1x34xf32, #tpu.memory_space<vmem>> -> memref<34xf32, #tpu.memory_space<vmem>>
      %27 = tpu.memref_slice %arg8[%c1_i32_17] : memref<2x!tpu.dma_semaphore, #tpu.memory_space<semaphore_mem>> -> memref<1x!tpu.dma_semaphore, #tpu.memory_space<semaphore_mem>>
      %28 = tpu.memref_squeeze %27 : memref<1x!tpu.dma_semaphore, #tpu.memory_space<semaphore_mem>> -> memref<!tpu.dma_semaphore, #tpu.memory_space<semaphore_mem>>
      tpu.enqueue_dma source(%24 : memref<34xf32, #tpu.memory_space<any>>) target(%26 : memref<34xf32, #tpu.memory_space<vmem>>) target_semaphore(%28 : memref<!tpu.dma_semaphore, #tpu.memory_space<semaphore_mem>>)
    }
    %c128_i32_1 = arith.constant 128 : i32
    %c0_i32_2 = arith.constant 0 : i32
    %c128_i32_3 = arith.constant 128 : i32
    %2 = arith.addi %c0_i32_2, %c128_i32_3 : i32
    %c1_i32_4 = arith.constant 1 : i32
    scf.for %arg9 = %c0_i32_2 to %2 step %c1_i32_4  : i32 {
      %c1_i32_12 = arith.constant 1 : i32
      %9 = arith.muli %arg9, %c1_i32_12 : i32
      %c0_i32_13 = arith.constant 0 : i32
      %10 = arith.addi %c0_i32_13, %9 : i32
      %11 = arith.addi %0, %10 : i32
      %12 = arith.index_cast %11 : i32 to index
      %13 = memref.load %arg1[%12] : memref<128xi32, #tpu.memory_space<smem>>
      %c0_i32_14 = arith.constant 0 : i32
      %c0_i32_15 = arith.constant 0 : i32
      %14 = tpu.memref_slice %arg3[%13, %c0_i32_15] : memref<64x34xf32, #tpu.memory_space<any>> -> memref<1x34xf32, #tpu.memory_space<any>>
      %15 = tpu.memref_squeeze %14 : memref<1x34xf32, #tpu.memory_space<any>> -> memref<34xf32, #tpu.memory_space<any>>
      %c0_i32_16 = arith.constant 0 : i32
      %16 = tpu.memref_slice %arg6[%10, %c0_i32_16] : memref<128x34xf32, #tpu.memory_space<vmem>> -> memref<1x34xf32, #tpu.memory_space<vmem>>
      %17 = tpu.memref_squeeze %16 : memref<1x34xf32, #tpu.memory_space<vmem>> -> memref<34xf32, #tpu.memory_space<vmem>>
      %18 = tpu.memref_slice %arg8[%c0_i32_14] : memref<2x!tpu.dma_semaphore, #tpu.memory_space<semaphore_mem>> -> memref<1x!tpu.dma_semaphore, #tpu.memory_space<semaphore_mem>>
      %19 = tpu.memref_squeeze %18 : memref<1x!tpu.dma_semaphore, #tpu.memory_space<semaphore_mem>> -> memref<!tpu.dma_semaphore, #tpu.memory_space<semaphore_mem>>
      tpu.wait_dma2 semaphore(%19 : memref<!tpu.dma_semaphore, #tpu.memory_space<semaphore_mem>>) src(%15 : memref<34xf32, #tpu.memory_space<any>>) dst(%17 : memref<34xf32, #tpu.memory_space<vmem>>)
      %20 = arith.addi %0, %10 : i32
      %21 = arith.index_cast %20 : i32 to index
      %22 = memref.load %arg2[%21] : memref<128xi32, #tpu.memory_space<smem>>
      %c1_i32_17 = arith.constant 1 : i32
      %c0_i32_18 = arith.constant 0 : i32
      %23 = tpu.memref_slice %arg4[%22, %c0_i32_18] : memref<96x34xf32, #tpu.memory_space<any>> -> memref<1x34xf32, #tpu.memory_space<any>>
      %24 = tpu.memref_squeeze %23 : memref<1x34xf32, #tpu.memory_space<any>> -> memref<34xf32, #tpu.memory_space<any>>
      %c0_i32_19 = arith.constant 0 : i32
      %25 = tpu.memref_slice %arg7[%10, %c0_i32_19] : memref<128x34xf32, #tpu.memory_space<vmem>> -> memref<1x34xf32, #tpu.memory_space<vmem>>
      %26 = tpu.memref_squeeze %25 : memref<1x34xf32, #tpu.memory_space<vmem>> -> memref<34xf32, #tpu.memory_space<vmem>>
      %27 = tpu.memref_slice %arg8[%c1_i32_17] : memref<2x!tpu.dma_semaphore, #tpu.memory_space<semaphore_mem>> -> memref<1x!tpu.dma_semaphore, #tpu.memory_space<semaphore_mem>>
      %28 = tpu.memref_squeeze %27 : memref<1x!tpu.dma_semaphore, #tpu.memory_space<semaphore_mem>> -> memref<!tpu.dma_semaphore, #tpu.memory_space<semaphore_mem>>
      tpu.wait_dma2 semaphore(%28 : memref<!tpu.dma_semaphore, #tpu.memory_space<semaphore_mem>>) src(%24 : memref<34xf32, #tpu.memory_space<any>>) dst(%26 : memref<34xf32, #tpu.memory_space<vmem>>)
    }
    %c128_i32_5 = arith.constant 128 : i32
    %c0 = arith.constant 0 : index
    %c0_6 = arith.constant 0 : index
    %3 = vector.load %arg6[%c0, %c0_6] : memref<128x34xf32, #tpu.memory_space<vmem>>, vector<128x34xf32>
    %c0_7 = arith.constant 0 : index
    %c0_8 = arith.constant 0 : index
    %4 = vector.load %arg7[%c0_7, %c0_8] : memref<128x34xf32, #tpu.memory_space<vmem>>, vector<128x34xf32>
    %5 = arith.mulf %3, %4 : vector<128x34xf32>
    %cst = arith.constant dense<0.000000e+00> : vector<128xf32>
    %6 = vector.multi_reduction <add>, %5, %cst [1] : vector<128x34xf32> to vector<128xf32>
    %7 = vector.shape_cast %6 : vector<128xf32> to vector<1x1x128xf32>
    %c0_9 = arith.constant 0 : index
    %c0_10 = arith.constant 0 : index
    %c0_11 = arith.constant 0 : index
    %8 = vector.load %arg5[%c0_9, %c0_10, %c0_11] : memref<1x1x128xf32, #tpu.memory_space<vmem>>, vector<1x1x128xf32>
    tpu.vector_store %arg5[%c0_9, %c0_10, %c0_11], %7 {strides = array<i32>} : memref<1x1x128xf32, #tpu.memory_space<vmem>>, vector<1x1x128xf32>,
    return
  }
  func.func @transform_2(%arg0: i32, %arg1: memref<128xi32, #tpu.memory_space<smem>>, %arg2: memref<128xi32, #tpu.memory_space<smem>>) -> (i32, i32, i32) {
    %c0_i32 = arith.constant 0 : i32
    %c0_i32_0 = arith.constant 0 : i32
    %c0_i32_1 = arith.constant 0 : i32
    return %arg0, %c0_i32, %c0_i32_0 : i32, i32, i32
  }
}

</mosaic_0001>

<llo_original>
// kernel: tpu_custom_call.1
$region0: #{tpu_custom_call.1}
  #allocation0 [shape = 'u32[]', space=smem, size = 0x4, offset = 0x4, fixed_abs, tag = 'smem constant byte address 0x4 - core index']
  #allocation1 [shape = 'u32[144,128]{1,0:T(1,128)}', space=vmem, size = 0x12000, scoped, tag = 'internal scratch']
  #allocation2 [shape = 'f32[128,34]{1,0:T(8,128)}', space=vmem, size = 0x10000, scoped, tag = 'scratch operand']
  #allocation3 [shape = 'f32[128,34]{1,0:T(8,128)}', space=vmem, size = 0x10000, scoped, tag = 'scratch operand']
  #allocation4 [shape = 's32[2]{0}', space=sflag, size = 0x8, scoped, tag = 'scratch operand']
  #allocation5 [shape = 's32[1]{0}', space=sflag, size = 0x4, scoped, tag = 'scoped memory for tpu_custom_call.1']
  #allocation6 [shape = 'u8[512]{0}', space=smem, size = 0x200, scoped, tag = 'prefetched SMEM operand 0']
  #allocation7 [shape = 'u8[512]{0}', space=smem, size = 0x200, scoped, tag = 'prefetched SMEM operand 1']
  #allocation10 [shape = 's32[]', space=sflag, size = 0x4, offset = 0, fixed_abs, tag = 'sflag constant byte address 0x0 - dummy sync flag']
  #allocation11 [shape = 's32[]', space=sflag, size = 0x4, offset = 0, fixed_abs, tag = 'sflag constant byte address 0x0 - dummy sync flag']
  %s0 = inlined_call_operand.vmem [shape: s32[128], index: 0, kind: input, shape index: {}]
  %s1 = inlined_call_operand.vmem [shape: s32[128], index: 1, kind: input, shape index: {}]
  %s2 = inlined_call_operand.vmem [shape: f32[64,34], index: 2, kind: input, shape index: {}]
  %s3 = inlined_call_operand.vmem [shape: f32[96,34], index: 3, kind: input, shape index: {}]
  %s4 = inlined_call_operand.hbm [shape: f32[1,1,128], index: 4, kind: output, shape index: {}]
  %s5 = sld [smem:[#allocation0]]
  $region84: #{tpu_custom_call.1} parent=0
    _
  %s7 = ssub.s32 1, %s5
  %s8 = scalar_select 0, %s7, %s5
  %s9 = sshll.u32 %s0, 4
  %s10 = int_to_ptr.vmem [resolvable:$true] %s9
  %12 = dma.vmem_to_smem %s10, 16, [#allocation6], [#allocation5]
  %s13 = sshll.u32 %s1, 4
  %s14 = int_to_ptr.vmem [resolvable:$true] %s13
  %16 = dma.vmem_to_smem %s14, 16, [#allocation7], [#allocation5]
  %17 = dma.done [#allocation5], 32
  %18 = sfence
  $region1: #{tpu_custom_call.1} parent=0
    #allocation8 [shape = 'u8[512]{0}', space=vmem, size = 0x400, scoped, tag = 'output window, operand 0, single buffered']
    #allocation9 [shape = 's32[1]{0}', space=sflag, size = 0x4, scoped, tag = 'scoped memory for tpu_custom_call.1']
    %19 = vsyncpa [#allocation9], 0
    %s20 = smul.u32 0, 128
    loop: start=0, step=1, limit=128
    $region2: #{tpu_custom_call.1} parent=1 // loop_pre_header
      _
    $region3: #{tpu_custom_call.1} parent=1 // loop_header
      %s22 = sphi 0, %s26
      %p23 = scmp.ge.s32.totalorder %s22, 128
    $region4: #{tpu_custom_call.1} parent=1 // loop_header_branch
      %25 = sbr.rel (%p23) target = $region8
    $region5: #{tpu_custom_call.1} parent=1 // loop_body
      %s27 = sadd.s32 %s20, %s22
      %s28 = sld [smem:[#allocation6 + %s27]]
      %s29 = scalar_lea.vmem %s2, %s28
      %s30 = scalar_lea.vmem [#allocation2], %s22
      %p32 = scmp.lt.u32.totalorder 1, 8
      %p33 = pneg %p32
      // Predicated region
      $region9: #{tpu_custom_call.1} parent=5 // pred_check
        _
      $region10: #{tpu_custom_call.1} parent=5 // pred_check_branch
        %35 = sbr.rel (%p32) target = $region12
      $region11: #{tpu_custom_call.1} parent=5 // pred_region
        %s50 = sand.u32 1, 7
        %p51 = scmp.eq.s32.totalorder %s50, 0
        %p52 = pneg %p51
        // Predicated region
        $region24: #{tpu_custom_call.1} parent=11 // pred_check
          _
        $region25: #{tpu_custom_call.1} parent=11 // pred_check_branch
          %54 = sbr.rel (%p51) target = $region27
        $region26: #{tpu_custom_call.1} parent=11 // pred_region
          %s55 = sand.u32 1, 7
          %s56 = ssub.s32 1, %s55
          %s57 = scalar_lea.vmem %s29, %s56
          %s58 = ssub.s32 1, %s55
          %s59 = scalar_lea.vmem %s30, %s58 [#allocation2]
          %s60 = sshllo.u32 0, %s55
          loop: start=0, step=1, limit=1
          $region28: #{tpu_custom_call.1} parent=26 // loop_pre_header
            _
          $region29: #{tpu_custom_call.1} parent=26 // loop_header
            %s62 = sphi 0, %s66
            %p63 = scmp.ge.s32.totalorder %s62, 1
            %s67 = sphi %s57, %s57
            %s68 = sphi %s59, %s59
          $region30: #{tpu_custom_call.1} parent=26 // loop_header_branch
            %65 = sbr.rel (%p63) target = $region34
          $region31: #{tpu_custom_call.1} parent=26 // loop_body
            %v69 = vld [vmem:[%s67] sm:%s60]
            %70 = vst [vmem:[%s68] sm:%s60] %v69
          $region32: #{tpu_custom_call.1} parent=26 // loop_footer
            %s66 = sadd.s32 1, %s62
          $region33: #{tpu_custom_call.1} parent=26 // loop_footer_branch
            %61 = sbr.rel target = $region29
          $region34: #{tpu_custom_call.1} parent=26 // loop_exit
            _
        $region27: #{tpu_custom_call.1} parent=11 // pred_fallthru
          _
      $region12: #{tpu_custom_call.1} parent=5 // pred_fallthru
        _
      // Predicated region
      $region13: #{tpu_custom_call.1} parent=5 // pred_check
        %p36 = pneg %p32
      $region14: #{tpu_custom_call.1} parent=5 // pred_check_branch
        %38 = sbr.rel (%p36) target = $region16
      $region15: #{tpu_custom_call.1} parent=5 // pred_region
        %s39 = sshllo.u32 0, 1
        loop: start=0, step=1, limit=1
        $region17: #{tpu_custom_call.1} parent=15 // loop_pre_header
          _
        $region18: #{tpu_custom_call.1} parent=15 // loop_header
          %s41 = sphi 0, %s45
          %p42 = scmp.ge.s32.totalorder %s41, 1
          %s46 = sphi %s29, %s29
          %s47 = sphi %s30, %s30
        $region19: #{tpu_custom_call.1} parent=15 // loop_header_branch
          %44 = sbr.rel (%p42) target = $region23
        $region20: #{tpu_custom_call.1} parent=15 // loop_body
          %v48 = vld [vmem:[%s46] sm:%s39]
          %49 = vst [vmem:[%s47] sm:%s39] %v48
        $region21: #{tpu_custom_call.1} parent=15 // loop_footer
          %s45 = sadd.s32 1, %s41
        $region22: #{tpu_custom_call.1} parent=15 // loop_footer_branch
          %40 = sbr.rel target = $region18
        $region23: #{tpu_custom_call.1} parent=15 // loop_exit
          _
      $region16: #{tpu_custom_call.1} parent=5 // pred_fallthru
        _
      // Predicated region
      $region35: #{tpu_custom_call.1} parent=5 // pred_check
        _
      $region36: #{tpu_custom_call.1} parent=5 // pred_check_branch
        %73 = sbr.rel (0) target = $region38
      $region37: #{tpu_custom_call.1} parent=5 // pred_region
        %74 = vsyncadd [#allocation4], 16
      $region38: #{tpu_custom_call.1} parent=5 // pred_fallthru
        _
      %s75 = sld [smem:[#allocation7 + %s27]]
      %s76 = scalar_lea.vmem %s3, %s75
      %s77 = scalar_lea.vmem [#allocation3], %s22
      %s78 = scalar_lea.sflag [#allocation4], 1
      %p80 = scmp.lt.u32.totalorder 1, 8
      %p81 = pneg %p80
      // Predicated region
      $region39: #{tpu_custom_call.1} parent=5 // pred_check
        _
      $region40: #{tpu_custom_call.1} parent=5 // pred_check_branch
        %83 = sbr.rel (%p80) target = $region42
      $region41: #{tpu_custom_call.1} parent=5 // pred_region
        %s98 = sand.u32 1, 7
        %p99 = scmp.eq.s32.totalorder %s98, 0
        %p100 = pneg %p99
        // Predicated region
        $region54: #{tpu_custom_call.1} parent=41 // pred_check
          _
        $region55: #{tpu_custom_call.1} parent=41 // pred_check_branch
          %102 = sbr.rel (%p99) target = $region57
        $region56: #{tpu_custom_call.1} parent=41 // pred_region
          %s103 = sand.u32 1, 7
          %s104 = ssub.s32 1, %s103
          %s105 = scalar_lea.vmem %s76, %s104
          %s106 = ssub.s32 1, %s103
          %s107 = scalar_lea.vmem %s77, %s106 [#allocation3]
          %s108 = sshllo.u32 0, %s103
          loop: start=0, step=1, limit=1
          $region58: #{tpu_custom_call.1} parent=56 // loop_pre_header
            _
          $region59: #{tpu_custom_call.1} parent=56 // loop_header
            %s110 = sphi 0, %s114
            %p111 = scmp.ge.s32.totalorder %s110, 1
            %s115 = sphi %s105, %s105
            %s116 = sphi %s107, %s107
          $region60: #{tpu_custom_call.1} parent=56 // loop_header_branch
            %113 = sbr.rel (%p111) target = $region64
          $region61: #{tpu_custom_call.1} parent=56 // loop_body
            %v117 = vld [vmem:[%s115] sm:%s108]
            %118 = vst [vmem:[%s116] sm:%s108] %v117
          $region62: #{tpu_custom_call.1} parent=56 // loop_footer
            %s114 = sadd.s32 1, %s110
          $region63: #{tpu_custom_call.1} parent=56 // loop_footer_branch
            %109 = sbr.rel target = $region59
          $region64: #{tpu_custom_call.1} parent=56 // loop_exit
            _
        $region57: #{tpu_custom_call.1} parent=41 // pred_fallthru
          _
      $region42: #{tpu_custom_call.1} parent=5 // pred_fallthru
        _
      // Predicated region
      $region43: #{tpu_custom_call.1} parent=5 // pred_check
        %p84 = pneg %p80
      $region44: #{tpu_custom_call.1} parent=5 // pred_check_branch
        %86 = sbr.rel (%p84) target = $region46
      $region45: #{tpu_custom_call.1} parent=5 // pred_region
        %s87 = sshllo.u32 0, 1
        loop: start=0, step=1, limit=1
        $region47: #{tpu_custom_call.1} parent=45 // loop_pre_header
          _
        $region48: #{tpu_custom_call.1} parent=45 // loop_header
          %s89 = sphi 0, %s93
          %p90 = scmp.ge.s32.totalorder %s89, 1
          %s94 = sphi %s76, %s76
          %s95 = sphi %s77, %s77
        $region49: #{tpu_custom_call.1} parent=45 // loop_header_branch
          %92 = sbr.rel (%p90) target = $region53
        $region50: #{tpu_custom_call.1} parent=45 // loop_body
          %v96 = vld [vmem:[%s94] sm:%s87]
          %97 = vst [vmem:[%s95] sm:%s87] %v96
        $region51: #{tpu_custom_call.1} parent=45 // loop_footer
          %s93 = sadd.s32 1, %s89
        $region52: #{tpu_custom_call.1} parent=45 // loop_footer_branch
          %88 = sbr.rel target = $region48
        $region53: #{tpu_custom_call.1} parent=45 // loop_exit
          _
      $region46: #{tpu_custom_call.1} parent=5 // pred_fallthru
        _
      // Predicated region
      $region65: #{tpu_custom_call.1} parent=5 // pred_check
        _
      $region66: #{tpu_custom_call.1} parent=5 // pred_check_branch
        %121 = sbr.rel (0) target = $region68
      $region67: #{tpu_custom_call.1} parent=5 // pred_region
        %122 = vsyncadd %s78, 16
      $region68: #{tpu_custom_call.1} parent=5 // pred_fallthru
        _
    $region6: #{tpu_custom_call.1} parent=1 // loop_footer
      %s26 = sadd.s32 1, %s22
    $region7: #{tpu_custom_call.1} parent=1 // loop_footer_branch
      %21 = sbr.rel target = $region3
    $region8: #{tpu_custom_call.1} parent=1 // loop_exit
      _
    loop: start=0, step=1, limit=128
    $region69: #{tpu_custom_call.1} parent=1 // loop_pre_header
      _
    $region70: #{tpu_custom_call.1} parent=1 // loop_header
      %s124 = sphi 0, %s128
      %p125 = scmp.ge.s32.totalorder %s124, 128
    $region71: #{tpu_custom_call.1} parent=1 // loop_header_branch
      %127 = sbr.rel (%p125) target = $region75
    $region72: #{tpu_custom_call.1} parent=1 // loop_body
      %s129 = sadd.s32 %s20, %s124
      %s130 = sld [smem:[#allocation6 + %s129]]
      %132 = dma.done [#allocation4], 16
      %s133 = sld [smem:[#allocation7 + %s129]]
      %s134 = scalar_lea.sflag [#allocation4], 1
      %136 = dma.done %s134, 16
    $region73: #{tpu_custom_call.1} parent=1 // loop_footer
      %s128 = sadd.s32 1, %s124
    $region74: #{tpu_custom_call.1} parent=1 // loop_footer_branch
      %123 = sbr.rel target = $region70
    $region75: #{tpu_custom_call.1} parent=1 // loop_exit
      _
    %v137 = vld [vmem:[#allocation2] sm:$0xff]
    %v138 = vld [vmem:[#allocation2 + $0x8] sm:$0xff]
    %v139 = vld [vmem:[#allocation2 + $0x10] sm:$0xff]
    %v140 = vld [vmem:[#allocation2 + $0x18] sm:$0xff]
    %v141 = vld [vmem:[#allocation2 + $0x20] sm:$0xff]
    %v142 = vld [vmem:[#allocation2 + $0x28] sm:$0xff]
    %v143 = vld [vmem:[#allocation2 + $0x30] sm:$0xff]
    %v144 = vld [vmem:[#allocation2 + $0x38] sm:$0xff]
    %v145 = vld [vmem:[#allocation2 + $0x40] sm:$0xff]
    %v146 = vld [vmem:[#allocation2 + $0x48] sm:$0xff]
    %v147 = vld [vmem:[#allocation2 + $0x50] sm:$0xff]
    %v148 = vld [vmem:[#allocation2 + $0x58] sm:$0xff]
    %v149 = vld [vmem:[#allocation2 + $0x60] sm:$0xff]
    %v150 = vld [vmem:[#allocation2 + $0x68] sm:$0xff]
    %v151 = vld [vmem:[#allocation2 + $0x70] sm:$0xff]
    %v152 = vld [vmem:[#allocation2 + $0x78] sm:$0xff]
    %v153 = vld [vmem:[#allocation3] sm:$0xff]
    %v154 = vld [vmem:[#allocation3 + $0x8] sm:$0xff]
    %v155 = vld [vmem:[#allocation3 + $0x10] sm:$0xff]
    %v156 = vld [vmem:[#allocation3 + $0x18] sm:$0xff]
    %v157 = vld [vmem:[#allocation3 + $0x20] sm:$0xff]
    %v158 = vld [vmem:[#allocation3 + $0x28] sm:$0xff]
    %v159 = vld [vmem:[#allocation3 + $0x30] sm:$0xff]
    %v160 = vld [vmem:[#allocation3 + $0x38] sm:$0xff]
    %v161 = vld [vmem:[#allocation3 + $0x40] sm:$0xff]
    %v162 = vld [vmem:[#allocation3 + $0x48] sm:$0xff]
    %v163 = vld [vmem:[#allocation3 + $0x50] sm:$0xff]
    %v164 = vld [vmem:[#allocation3 + $0x58] sm:$0xff]
    %v165 = vld [vmem:[#allocation3 + $0x60] sm:$0xff]
    %v166 = vld [vmem:[#allocation3 + $0x68] sm:$0xff]
    %v167 = vld [vmem:[#allocation3 + $0x70] sm:$0xff]
    %v168 = vld [vmem:[#allocation3 + $0x78] sm:$0xff]
    %v169 = vmul.f32 %v137, %v153
    %v170 = vmul.f32 %v138, %v154
    %v171 = vmul.f32 %v139, %v155
    %v172 = vmul.f32 %v140, %v156
    %v173 = vmul.f32 %v141, %v157
    %v174 = vmul.f32 %v142, %v158
    %v175 = vmul.f32 %v143, %v159
    %v176 = vmul.f32 %v144, %v160
    %v177 = vmul.f32 %v145, %v161
    %v178 = vmul.f32 %v146, %v162
    %v179 = vmul.f32 %v147, %v163
    %v180 = vmul.f32 %v148, %v164
    %v181 = vmul.f32 %v149, %v165
    %v182 = vmul.f32 %v150, %v166
    %v183 = vmul.f32 %v151, %v167
    %v184 = vmul.f32 %v152, %v168
    %vm185 = vcmask 277504
    %v186 = vsel %vm185, %v169, 0.0
    %187 = vadd.xlane.f32.xlu0 %v186
    %v188 = vpop.xlane.xlu0 %187
    %v189 = vsel %vm185, %v170, 0.0
    %190 = vadd.xlane.f32.xlu0 %v189
    %v191 = vpop.xlane.xlu0 %190
    %v192 = vsel %vm185, %v171, 0.0
    %193 = vadd.xlane.f32.xlu0 %v192
    %v194 = vpop.xlane.xlu0 %193
    %v195 = vsel %vm185, %v172, 0.0
    %196 = vadd.xlane.f32.xlu0 %v195
    %v197 = vpop.xlane.xlu0 %196
    %v198 = vsel %vm185, %v173, 0.0
    %199 = vadd.xlane.f32.xlu0 %v198
    %v200 = vpop.xlane.xlu0 %199
    %v201 = vsel %vm185, %v174, 0.0
    %202 = vadd.xlane.f32.xlu0 %v201
    %v203 = vpop.xlane.xlu0 %202
    %v204 = vsel %vm185, %v175, 0.0
    %205 = vadd.xlane.f32.xlu0 %v204
    %v206 = vpop.xlane.xlu0 %205
    %v207 = vsel %vm185, %v176, 0.0
    %208 = vadd.xlane.f32.xlu0 %v207
    %v209 = vpop.xlane.xlu0 %208
    %v210 = vsel %vm185, %v177, 0.0
    %211 = vadd.xlane.f32.xlu0 %v210
    %v212 = vpop.xlane.xlu0 %211
    %v213 = vsel %vm185, %v178, 0.0
    %214 = vadd.xlane.f32.xlu0 %v213
    %v215 = vpop.xlane.xlu0 %214
    %v216 = vsel %vm185, %v179, 0.0
    %217 = vadd.xlane.f32.xlu0 %v216
    %v218 = vpop.xlane.xlu0 %217
    %v219 = vsel %vm185, %v180, 0.0
    %220 = vadd.xlane.f32.xlu0 %v219
    %v221 = vpop.xlane.xlu0 %220
    %v222 = vsel %vm185, %v181, 0.0
    %223 = vadd.xlane.f32.xlu0 %v222
    %v224 = vpop.xlane.xlu0 %223
    %v225 = vsel %vm185, %v182, 0.0
    %226 = vadd.xlane.f32.xlu0 %v225
    %v227 = vpop.xlane.xlu0 %226
    %v228 = vsel %vm185, %v183, 0.0
    %229 = vadd.xlane.f32.xlu0 %v228
    %v230 = vpop.xlane.xlu0 %229
    %v231 = vsel %vm185, %v184, 0.0
    %232 = vadd.xlane.f32.xlu0 %v231
    %v233 = vpop.xlane.xlu0 %232
    %v250 = vlaneseq
    %v251 = vand.u32 %v250, 127
    %v252 = vlaneseq
    %v253 = vshrl.u32 %v252, 7
    %v254 = vsub.s32 %v251, %v253
    %v255 = vrot.slane %v188, %v254
    %v256 = vadd.s32 %v251, 4294967288
    %v257 = vlaneseq
    %v258 = vshrl.u32 %v257, 7
    %v259 = vsub.s32 %v256, %v258
    %v260 = vrot.slane %v191, %v259
    %vm261 = vcmask 130112
    %v262 = vsel %vm261, %v260, %v255
    %v263 = vadd.s32 %v251, 4294967280
    %v264 = vlaneseq
    %v265 = vshrl.u32 %v264, 7
    %v266 = vsub.s32 %v263, %v265
    %v267 = vrot.slane %v194, %v266
    %vm268 = vcmask 195712
    %v269 = vsel %vm268, %v267, %v262
    %v270 = vadd.s32 %v251, 4294967272
    %v271 = vlaneseq
    %v272 = vshrl.u32 %v271, 7
    %v273 = vsub.s32 %v270, %v272
    %v274 = vrot.slane %v197, %v273
    %vm275 = vcmask 261312
    %v276 = vsel %vm275, %v274, %v269
    %v277 = vadd.s32 %v251, 4294967264
    %v278 = vlaneseq
    %v279 = vshrl.u32 %v278, 7
    %v280 = vsub.s32 %v277, %v279
    %v281 = vrot.slane %v200, %v280
    %vm282 = vcmask 326912
    %v283 = vsel %vm282, %v281, %v276
    %v284 = vadd.s32 %v251, 4294967256
    %v285 = vlaneseq
    %v286 = vshrl.u32 %v285, 7
    %v287 = vsub.s32 %v284, %v286
    %v288 = vrot.slane %v203, %v287
    %vm289 = vcmask 392512
    %v290 = vsel %vm289, %v288, %v283
    %v291 = vadd.s32 %v251, 4294967248
    %v292 = vlaneseq
    %v293 = vshrl.u32 %v292, 7
    %v294 = vsub.s32 %v291, %v293
    %v295 = vrot.slane %v206, %v294
    %vm296 = vcmask 458112
    %v297 = vsel %vm296, %v295, %v290
    %v298 = vadd.s32 %v251, 4294967240
    %v299 = vlaneseq
    %v300 = vshrl.u32 %v299, 7
    %v301 = vsub.s32 %v298, %v300
    %v302 = vrot.slane %v209, %v301
    %vm303 = vcmask 523712
    %v304 = vsel %vm303, %v302, %v297
    %v305 = vadd.s32 %v251, 4294967232
    %v306 = vlaneseq
    %v307 = vshrl.u32 %v306, 7
    %v308 = vsub.s32 %v305, %v307
    %v309 = vrot.slane %v212, %v308
    %vm310 = vcmask 589312
    %v311 = vsel %vm310, %v309, %v304
    %v312 = vadd.s32 %v251, 4294967224
    %v313 = vlaneseq
    %v314 = vshrl.u32 %v313, 7
    %v315 = vsub.s32 %v312, %v314
    %v316 = vrot.slane %v215, %v315
    %vm317 = vcmask 654912
    %v318 = vsel %vm317, %v316, %v311
    %v319 = vadd.s32 %v251, 4294967216
    %v320 = vlaneseq
    %v321 = vshrl.u32 %v320, 7
    %v322 = vsub.s32 %v319, %v321
    %v323 = vrot.slane %v218, %v322
    %vm324 = vcmask 720512
    %v325 = vsel %vm324, %v323, %v318
    %v326 = vadd.s32 %v251, 4294967208
    %v327 = vlaneseq
    %v328 = vshrl.u32 %v327, 7
    %v329 = vsub.s32 %v326, %v328
    %v330 = vrot.slane %v221, %v329
    %vm331 = vcmask 786112
    %v332 = vsel %vm331, %v330, %v325
    %v333 = vadd.s32 %v251, 4294967200
    %v334 = vlaneseq
    %v335 = vshrl.u32 %v334, 7
    %v336 = vsub.s32 %v333, %v335
    %v337 = vrot.slane %v224, %v336
    %vm338 = vcmask 851712
    %v339 = vsel %vm338, %v337, %v332
    %v340 = vadd.s32 %v251, 4294967192
    %v341 = vlaneseq
    %v342 = vshrl.u32 %v341, 7
    %v343 = vsub.s32 %v340, %v342
    %v344 = vrot.slane %v227, %v343
    %vm345 = vcmask 917312
    %v346 = vsel %vm345, %v344, %v339
    %v347 = vadd.s32 %v251, 4294967184
    %v348 = vlaneseq
    %v349 = vshrl.u32 %v348, 7
    %v350 = vsub.s32 %v347, %v349
    %v351 = vrot.slane %v230, %v350
    %vm352 = vcmask 982912
    %v353 = vsel %vm352, %v351, %v346
    %v354 = vadd.s32 %v251, 4294967176
    %v355 = vlaneseq
    %v356 = vshrl.u32 %v355, 7
    %v357 = vsub.s32 %v354, %v356
    %v358 = vrot.slane %v233, %v357
    %vm359 = vcmask 1048512
    %v360 = vsel %vm359, %v358, %v353
    %362 = vst [vmem:[#allocation8] sm:$0x1] %v360
    // Predicated region
    $region76: #{tpu_custom_call.1} parent=1 // pred_check
      _
    $region77: #{tpu_custom_call.1} parent=1 // pred_check_branch
      %364 = sbr.rel (0) target = $region79
    $region78: #{tpu_custom_call.1} parent=1 // pred_region
      %s366 = ssub.s32 16, 16
      %367 = vsyncadd [#allocation9], %s366
      %s369 = sshll.u32 [#allocation8], 4
      %s370 = int_to_ptr.vmem [resolvable:$true] %s369
      %372 = dma.vmem_to_hbm [thread:$0]  %s370, 16, %s4, [#allocation9]
    $region79: #{tpu_custom_call.1} parent=1 // pred_fallthru
      _
    // Predicated region
    $region80: #{tpu_custom_call.1} parent=1 // pred_check
      _
    $region81: #{tpu_custom_call.1} parent=1 // pred_check_branch
      %374 = sbr.rel (0) target = $region83
    $region82: #{tpu_custom_call.1} parent=1 // pred_region
      %375 = dma.done [#allocation9], 16
    $region83: #{tpu_custom_call.1} parent=1 // pred_fallthru
      _
    %376 = vsyncpa [#allocation9], 1
  %377 = vsyncmov [#allocation4]
  %s378 = vpop.sfrf %377
  %p379 = scmp.eq.s32.totalorder %s378, 0
  %p380 = pneg %p379
  %382 = shalt.err (%p380)
  %s383 = scalar_lea.sflag [#allocation4], 1
  %384 = vsyncmov %s383
  %s385 = vpop.sfrf %384
  %p386 = scmp.eq.s32.totalorder %s385, 0
  %p387 = pneg %p386
  %389 = shalt.err (%p387)

</llo_original>
